<compile_context>
chip_gen: v5e
topology: v5e:2x2
jax: 0.10.0
libtpu: 0.0.40
codegen_flags: <defaults>
</compile_context>

<pallas_src>
import jax
import jax.numpy as jnp
from jax import lax
from jax.experimental import pallas as pl
from jax.experimental.pallas import tpu as pltpu


def _linear_add_kernel(x_ref, w_ref, b_ref, other_ref, o_ref):
    # y[b, n] = sum_k x[b, k] * w[n, k]   (PyTorch nn.Linear layout, no
    # transpose needed: contract dim 1 of both operands on the MXU).
    y = lax.dot_general(
        x_ref[...], w_ref[...],
        dimension_numbers=(((1,), (1,)), ((), ())),
        preferred_element_type=jnp.float32,
    )
    # Bias + `other` adds are free VPU filler inside the kernel.
    o_ref[...] = (y + b_ref[...] + other_ref[...]).astype(o_ref.dtype)


def linear_add(x, w, bias2d, other):
    """Computes (x @ w.T + bias) + other in a single Pallas kernel.

    x:      (B, K)  float32
    w:      (N, K)  float32   (PyTorch nn.Linear weight layout, untransposed)
    bias2d: (1, N)  float32   (bias stored 2-D once at parameter setup)
    other:  (1, N)  float32   (broadcast over batch)
    returns (B, N) float32
    """
    B, K = x.shape
    N = w.shape[0]

    cost = pl.CostEstimate(
        flops=2 * B * K * N,
        bytes_accessed=4 * (B * K + N * K + N + N + B * N),
        transcendentals=0,
    )

    # Grid-less call: all operands land untiled in VMEM, no pipeline
    # scaffolding, no double buffering — the whole call is launch-bound.
    return pl.pallas_call(
        _linear_add_kernel,
        out_shape=jax.ShapeDtypeStruct((B, N), jnp.float32),
        in_specs=[
            pl.BlockSpec(memory_space=pltpu.MemorySpace.VMEM),  # x
            pl.BlockSpec(memory_space=pltpu.MemorySpace.VMEM),  # w (N, K)
            pl.BlockSpec(memory_space=pltpu.MemorySpace.VMEM),  # bias (1, N)
            pl.BlockSpec(memory_space=pltpu.MemorySpace.VMEM),  # other (1, N)
        ],
        out_specs=pl.BlockSpec(memory_space=pltpu.MemorySpace.VMEM),
        cost_estimate=cost,
    )(x, w, bias2d, other)


if __name__ == "__main__":
    key = jax.random.PRNGKey(0)
    k_x, k_w, k_b, k_o = jax.random.split(key, 4)

    in_features, out_features, batch = 20, 3, 1

    # "Parameters" set up once in the right layout (nn.Linear(20, 3)):
    #   weight (3, 20) as PyTorch stores it, bias stored directly as (1, 3).
    weight = jax.random.uniform(k_w, (out_features, in_features), jnp.float32,
                                minval=-0.2, maxval=0.2)
    bias2d = jax.random.uniform(k_b, (1, out_features), jnp.float32,
                                minval=-0.2, maxval=0.2)

    # Inputs.
    x1 = jax.random.uniform(k_x, (batch, in_features), jnp.float32)
    other = jax.random.uniform(k_o, (1, out_features), jnp.float32)

    out = linear_add(x1, weight, bias2d, other)
    out = jax.block_until_ready(out)

    # Reference check in plain JAX.
    ref = x1 @ weight.T + bias2d + other
    assert out.shape == (batch, out_features)
    assert jnp.allclose(out, ref, atol=1e-5, rtol=1e-5)

    print("KERNEL_OK")
</pallas_src>

<mosaic_0001>
module attributes {stable_mosaic.version = 11 : i64} {
  func.func @_linear_add_kernel(%arg0: memref<1x20xf32, #tpu.memory_space<vmem>>, %arg1: memref<3x20xf32, #tpu.memory_space<vmem>>, %arg2: memref<1x3xf32, #tpu.memory_space<vmem>>, %arg3: memref<1x3xf32, #tpu.memory_space<vmem>>, %arg4: memref<1x3xf32, #tpu.memory_space<vmem>>) attributes {dimension_semantics = [], scalar_prefetch = 0 : i64, scratch_operands = 0 : i64, tpu.core_type = #tpu.core_type<tc>} {
    %c0 = arith.constant 0 : index
    %c0_0 = arith.constant 0 : index
    %0 = vector.load %arg0[%c0, %c0_0] : memref<1x20xf32, #tpu.memory_space<vmem>>, vector<1x20xf32>
    %c0_1 = arith.constant 0 : index
    %c0_2 = arith.constant 0 : index
    %1 = vector.load %arg1[%c0_1, %c0_2] : memref<3x20xf32, #tpu.memory_space<vmem>>, vector<3x20xf32>
    %cst = arith.constant dense<0.000000e+00> : vector<1x3xf32>
    %2 = tpu.matmul %0, %1, %cst {dimension_numbers = #tpu.dot_dimension_numbers<[1], [1], [0], [0], [0, 0, 1, 0], [], []>} : vector<1x20xf32>, vector<3x20xf32>, vector<1x3xf32> -> vector<1x3xf32>
    %c0_3 = arith.constant 0 : index
    %c0_4 = arith.constant 0 : index
    %3 = vector.load %arg2[%c0_3, %c0_4] : memref<1x3xf32, #tpu.memory_space<vmem>>, vector<1x3xf32>
    %4 = arith.addf %2, %3 : vector<1x3xf32>
    %c0_5 = arith.constant 0 : index
    %c0_6 = arith.constant 0 : index
    %5 = vector.load %arg3[%c0_5, %c0_6] : memref<1x3xf32, #tpu.memory_space<vmem>>, vector<1x3xf32>
    %6 = arith.addf %4, %5 : vector<1x3xf32>
    %c0_7 = arith.constant 0 : index
    %c0_8 = arith.constant 0 : index
    %7 = vector.load %arg4[%c0_7, %c0_8] : memref<1x3xf32, #tpu.memory_space<vmem>>, vector<1x3xf32>
    tpu.vector_store %arg4[%c0_7, %c0_8], %6 {strides = array<i32>} : memref<1x3xf32, #tpu.memory_space<vmem>>, vector<1x3xf32>,
    return
  }
}

</mosaic_0001>

<llo_original>
// kernel: tpu_custom_call.1
$region0: #{tpu_custom_call.1}
  #allocation0 [shape = 'u32[]', space=smem, size = 0x4, offset = 0x4, fixed_abs, tag = 'smem constant byte address 0x4 - core index']
  #allocation1 [shape = 'u32[72,128]{1,0:T(1,128)}', space=vmem, size = 0x9000, scoped, tag = 'internal scratch']
  %s0 = inlined_call_operand.hbm [shape: f32[1,20], index: 0, kind: input, shape index: {}]
  %s1 = inlined_call_operand.hbm [shape: f32[3,20], index: 1, kind: input, shape index: {}]
  %s2 = inlined_call_operand.vmem [shape: f32[1,3], index: 2, kind: input, shape index: {}]
  %s3 = inlined_call_operand.vmem [shape: f32[1,3], index: 3, kind: input, shape index: {}]
  %s4 = inlined_call_operand.hbm [shape: f32[1,3], index: 4, kind: output, shape index: {}]
  %s5 = sld [smem:[#allocation0]]
  $region34: #{tpu_custom_call.1} parent=0
    _
  %s7 = ssub.s32 1, %s5
  %s8 = scalar_select 0, %s7, %s5
  $region1: #{tpu_custom_call.1} parent=0
    #allocation2 [shape = 'u8[512]{0}', space=vmem, size = 0x400, scoped, tag = 'input window, operand 0, single buffered']
    #allocation3 [shape = 's32[1]{0}', space=sflag, size = 0x4, scoped, tag = 'scoped memory for tpu_custom_call.1']
    #allocation4 [shape = 's32[1]{0}', space=sflag, size = 0x4, scoped, tag = 'scoped memory for tpu_custom_call.1']
    #allocation5 [shape = 'u8[2048]{0}', space=vmem, size = 0x800, scoped, tag = 'input window, operand 1, single buffered']
    #allocation6 [shape = 's32[1]{0}', space=sflag, size = 0x4, scoped, tag = 'scoped memory for tpu_custom_call.1']
    #allocation7 [shape = 'u8[512]{0}', space=vmem, size = 0x400, scoped, tag = 'output window, operand 0, single buffered']
    %9 = vsyncpa [#allocation3], 0
    %10 = vsyncpa [#allocation6], 0
    %11 = vsyncpa [#allocation4], 0
    // Predicated region
    $region2: #{tpu_custom_call.1} parent=1 // pred_check
      _
    $region3: #{tpu_custom_call.1} parent=1 // pred_check_branch
      %13 = sbr.rel (0) target = $region5
    $region4: #{tpu_custom_call.1} parent=1 // pred_region
      %15 = vsyncadd [#allocation3], 0
      %s17 = sshll.u32 %s0, 4
      %s18 = int_to_ptr.hbm [resolvable:$true] %s17
      %s19 = sshll.u32 [#allocation2], 4
      %s20 = int_to_ptr.vmem [resolvable:$true] %s19
      %22 = dma.hbm_to_vmem [thread:$0]  %s18, 16, %s20, [#allocation3]
    $region5: #{tpu_custom_call.1} parent=1 // pred_fallthru
      _
    // Predicated region
    $region6: #{tpu_custom_call.1} parent=1 // pred_check
      _
    $region7: #{tpu_custom_call.1} parent=1 // pred_check_branch
      %24 = sbr.rel (0) target = $region9
    $region8: #{tpu_custom_call.1} parent=1 // pred_region
      %26 = vsyncadd [#allocation6], 0
      %s28 = sshll.u32 %s1, 4
      %s29 = int_to_ptr.hbm [resolvable:$true] %s28
      %s30 = sshll.u32 [#allocation5], 4
      %s31 = int_to_ptr.vmem [resolvable:$true] %s30
      %33 = dma.hbm_to_vmem [thread:$0]  %s29, 64, %s31, [#allocation6]
    $region9: #{tpu_custom_call.1} parent=1 // pred_fallthru
      _
    // Predicated region
    $region10: #{tpu_custom_call.1} parent=1 // pred_check
      _
    $region11: #{tpu_custom_call.1} parent=1 // pred_check_branch
      %35 = sbr.rel (0) target = $region13
    $region12: #{tpu_custom_call.1} parent=1 // pred_region
      _
    $region13: #{tpu_custom_call.1} parent=1 // pred_fallthru
      _
    // Predicated region
    $region14: #{tpu_custom_call.1} parent=1 // pred_check
      _
    $region15: #{tpu_custom_call.1} parent=1 // pred_check_branch
      %37 = sbr.rel (0) target = $region17
    $region16: #{tpu_custom_call.1} parent=1 // pred_region
      _
    $region17: #{tpu_custom_call.1} parent=1 // pred_fallthru
      _
    // Predicated region
    $region18: #{tpu_custom_call.1} parent=1 // pred_check
      _
    $region19: #{tpu_custom_call.1} parent=1 // pred_check_branch
      %39 = sbr.rel (0) target = $region21
    $region20: #{tpu_custom_call.1} parent=1 // pred_region
      %41 = dma.done [#allocation3], 16
    $region21: #{tpu_custom_call.1} parent=1 // pred_fallthru
      _
    // Predicated region
    $region22: #{tpu_custom_call.1} parent=1 // pred_check
      _
    $region23: #{tpu_custom_call.1} parent=1 // pred_check_branch
      %43 = sbr.rel (0) target = $region25
    $region24: #{tpu_custom_call.1} parent=1 // pred_region
      %45 = dma.done [#allocation6], 64
    $region25: #{tpu_custom_call.1} parent=1 // pred_fallthru
      _
    %v46 = vld [vmem:[#allocation2] sm:$0x1]
    %v47 = vld [vmem:[#allocation5] sm:$0x7]
    %v48 = vld [vmem:[%s2] sm:$0x1]
    %vm49 = vcmask 162816
    %v51 = vsel %vm49, %v46, 0
    %v54 = vsel %vm49, %v47, 0
    %56 = vmatpush.xpose.msra.mxu0 0.0
    %57 = vmatpush.xpose.msra.mxu0 0.0
    %58 = vmatpush.xpose.msra.mxu0 0.0
    %59 = vmatpush.xpose.msra.mxu0 0.0
    %60 = vmatpush.xpose.msra.mxu0 0.0
    %61 = vmatpush.xpose.msra.mxu0 0.0
    %62 = vmatpush.xpose.msra.mxu0 0.0
    %63 = vmatpush.xpose.msra.mxu0 0.0
    %64 = vmatpush.xpose.msra.mxu0 0.0
    %65 = vmatpush.xpose.msra.mxu0 0.0
    %66 = vmatpush.xpose.msra.mxu0 0.0
    %67 = vmatpush.xpose.msra.mxu0 0.0
    %68 = vmatpush.xpose.msra.mxu0 0.0
    %69 = vmatpush.xpose.msra.mxu0 0.0
    %70 = vmatpush.xpose.msra.mxu0 0.0
    %71 = vmatpush.xpose.msra.mxu0 %v54
    %72 = vmatmul.f32.gmra.mxu0 %v51
    %v73 = vpop.f32.mrf.mxu0
    %v74 = vadd.f32 %v48, %v73
    %75 = vdwg.mxu0
    %v76 = vld [vmem:[%s3] sm:$0x1]
    %v77 = vadd.f32 %v74, %v76
    %vm78 = vcmask 16384
    %79 = vst.msk [vmem:[#allocation7] sm:$0x1] %vm78, %v77
    // Predicated region
    $region26: #{tpu_custom_call.1} parent=1 // pred_check
      _
    $region27: #{tpu_custom_call.1} parent=1 // pred_check_branch
      %81 = sbr.rel (0) target = $region29
    $region28: #{tpu_custom_call.1} parent=1 // pred_region
      %83 = vsyncadd [#allocation4], 0
      %s85 = sshll.u32 [#allocation7], 4
      %s86 = int_to_ptr.vmem [resolvable:$true] %s85
      %s87 = sshll.u32 %s4, 4
      %s88 = int_to_ptr.hbm [resolvable:$true] %s87
      %90 = dma.vmem_to_hbm [thread:$0]  %s86, 16, %s88, [#allocation4]
    $region29: #{tpu_custom_call.1} parent=1 // pred_fallthru
      _
    // Predicated region
    $region30: #{tpu_custom_call.1} parent=1 // pred_check
      _
    $region31: #{tpu_custom_call.1} parent=1 // pred_check_branch
      %92 = sbr.rel (0) target = $region33
    $region32: #{tpu_custom_call.1} parent=1 // pred_region
      %94 = dma.done [#allocation4], 16
    $region33: #{tpu_custom_call.1} parent=1 // pred_fallthru
      _
    %95 = vsyncpa [#allocation3], 1
    %96 = vsyncpa [#allocation6], 1
    %97 = vsyncpa [#allocation4], 1

</llo_original>
